<compile_context>
chip_gen: v6e
topology: v6e:2x2x1
jax: 0.10.0
libtpu: 0.0.40
codegen_flags: <defaults>
</compile_context>

<pallas_src>
import jax
import jax.numpy as jnp
import numpy as np
from jax.experimental import pallas as pl
from jax.experimental.pallas import tpu as pltpu

WEIGHT_CE = 1.0
WEIGHT_DICE = 1.0
SMOOTH = 1e-5

_LANES = 128
_ROW_CAP = 2048     # rows per block -> 1 MiB f32 logits + 0.5 MiB bf16 targets per buffer
_ROW_ALIGN = 16     # sublane multiple valid for both f32 (8) and bf16 (16) packing
_PAD_LOGIT = -30.0  # sigmoid(-30) ~ 9e-14, bce(x=-30, t=0) ~ 9e-14 -> padding is inert


def _round_up(n: int, m: int) -> int:
    return ((n + m - 1) // m) * m


def _dc_bce_stats_kernel(x_ref, t_ref, o_ref):
    """Accumulate per-(batch, channel) statistics into the resident output block.

    o_ref block (1, 1, 4, 8, 128) f32 holds the folded partial sums of
    [p*t, p, t, bce]; the final lane/sublane/batch reductions happen in JAX.
    """
    s = pl.program_id(2)
    rows = x_ref.shape[2]
    lanes = x_ref.shape[3]

    # Upcast in-register; inputs stream at native width (bf16 halves HBM bytes).
    x = x_ref[0, 0].astype(jnp.float32)      # (rows, 128) logits
    t = t_ref[0, 0].astype(jnp.float32)      # (rows, 128) region targets (0/1)

    # sigmoid via tanh: divide moved off the VALU onto the EUP, exact numerics.
    p = 0.5 * jnp.tanh(0.5 * x) + 0.5
    # Numerically stable BCE-with-logits; e = exp(-|x|) <= 1 so log(1+e) is safe.
    e = jnp.exp(-jnp.abs(x))
    bce = jnp.maximum(x, 0.0) - x * t + jnp.log(1.0 + e)

    # Sublane tree-reduce rows -> 8 (pure VALU vreg adds, no XLU): accumulator
    # store traffic is 4 vregs per grid step regardless of the block size.
    def fold(v):
        return jnp.sum(v.reshape(rows // 8, 8, lanes), axis=0)

    i_part = fold(p * t)
    p_part = fold(p)
    t_part = fold(t)
    b_part = fold(bce)

    @pl.when(s == 0)
    def _first():                            # init folded into the first step
        o_ref[0, 0, 0] = i_part
        o_ref[0, 0, 1] = p_part
        o_ref[0, 0, 2] = t_part
        o_ref[0, 0, 3] = b_part

    @pl.when(s > 0)
    def _rest():
        o_ref[0, 0, 0] += i_part
        o_ref[0, 0, 1] += p_part
        o_ref[0, 0, 2] += t_part
        o_ref[0, 0, 3] += b_part


def dc_and_bce_loss(net_output: jax.Array, target: jax.Array) -> jax.Array:
    """net_output, target: (B, C, *spatial). Returns the scalar loss (f32)."""
    B, C = int(net_output.shape[0]), int(net_output.shape[1])
    hw = int(np.prod(net_output.shape[2:]))
    x = net_output.reshape(B, C, hw)
    # bf16 targets are lossless for one-hot / region (0/1) labels (the module's
    # contract: "target must be one hot encoded") and halve target HBM traffic.
    t = target.reshape(B, C, hw).astype(jnp.bfloat16)

    # Spatially-dense re-layout: sublanes carry spatial data, not channels.
    rows = -(-hw // _LANES)
    block_rows = min(_ROW_CAP, _round_up(rows, _ROW_ALIGN))
    rows_pad = _round_up(rows, block_rows)
    hw_pad = rows_pad * _LANES
    if hw_pad != hw:
        pad = hw_pad - hw
        x = jnp.pad(x, ((0, 0), (0, 0), (0, pad)), constant_values=_PAD_LOGIT)
        t = jnp.pad(t, ((0, 0), (0, 0), (0, pad)), constant_values=0.0)
    x = x.reshape(B, C, rows_pad, _LANES)
    t = t.reshape(B, C, rows_pad, _LANES)
    n_spatial = rows_pad // block_rows

    stats = pl.pallas_call(
        _dc_bce_stats_kernel,
        out_shape=jax.ShapeDtypeStruct((B, C, 4, 8, _LANES), jnp.float32),
        grid_spec=pltpu.PrefetchScalarGridSpec(
            num_scalar_prefetch=0,
            grid=(B, C, n_spatial),
            in_specs=[
                pl.BlockSpec((1, 1, block_rows, _LANES), lambda b, c, s: (b, c, s, 0)),
                pl.BlockSpec((1, 1, block_rows, _LANES), lambda b, c, s: (b, c, s, 0)),
            ],
            out_specs=pl.BlockSpec(
                (1, 1, 4, 8, _LANES), lambda b, c, s: (b, c, 0, 0, 0)
            ),
        ),
        compiler_params=pltpu.CompilerParams(
            # (b, c) blocks are independent -> megacore-shardable on v7x even for
            # B=1-2; the spatial axis reduces into the resident output block.
            dimension_semantics=("parallel", "parallel", "arbitrary"),
        ),
    )(x, t)

    # Tiny JAX epilogue: finish lane/sublane/batch reductions + scalar loss math.
    stats = jnp.sum(stats, axis=(-2, -1))          # (B, C, 4)
    intersect = jnp.sum(stats[..., 0], axis=0)     # (C,)
    sum_pred = jnp.sum(stats[..., 1], axis=0)      # (C,)
    sum_gt = jnp.sum(stats[..., 2], axis=0)        # (C,)
    bce_sum = jnp.sum(stats[..., 3])               # scalar

    n_elems = float(B * C * hw)                    # true (unpadded) count, exact
    ce = bce_sum / n_elems
    dc = (2.0 * intersect + SMOOTH) / jnp.maximum(sum_gt + sum_pred + SMOOTH, 1e-8)
    dc_loss = -jnp.mean(dc)
    return WEIGHT_CE * ce + WEIGHT_DICE * dc_loss


def _reference(net_output, target):
    x = net_output.astype(jnp.float32)
    t = target.astype(jnp.float32)
    # BCEWithLogitsLoss(reduction='mean')
    ce = jnp.mean(jnp.maximum(x, 0.0) - x * t + jnp.log1p(jnp.exp(-jnp.abs(x))))
    # MemoryEfficientSoftDiceLoss(apply_nonlin=sigmoid, batch_dice=True,
    #                             do_bg=True, smooth=1e-5, ddp=False)
    p = jax.nn.sigmoid(x)
    axes = tuple(range(2, x.ndim))
    intersect = jnp.sum(p * t, axis=axes).sum(0)
    sum_pred = jnp.sum(p, axis=axes).sum(0)
    sum_gt = jnp.sum(t, axis=axes).sum(0)
    dc = (2.0 * intersect + SMOOTH) / jnp.maximum(sum_gt + sum_pred + SMOOTH, 1e-8)
    return WEIGHT_CE * ce + WEIGHT_DICE * (-jnp.mean(dc))


if __name__ == "__main__":
    key = jax.random.PRNGKey(0)
    k1, k2 = jax.random.split(key)
    B, C, H, W = 2, 4, 16, 16
    net_output = jax.random.normal(k1, (B, C, H, W), dtype=jnp.float32)
    # region-based one-hot-ish target (each channel independently 0/1)
    target = (jax.random.uniform(k2, (B, C, H, W)) > 0.5).astype(jnp.float32)

    # f32 logits path
    loss = jax.block_until_ready(dc_and_bce_loss(net_output, target))
    ref = _reference(net_output, target)
    np.testing.assert_allclose(np.asarray(loss), np.asarray(ref), rtol=1e-4, atol=1e-4)

    # bf16 logits path (half the logit HBM bytes; kernel upcasts in-register)
    x_bf = net_output.astype(jnp.bfloat16)
    loss_bf = jax.block_until_ready(dc_and_bce_loss(x_bf, target))
    ref_bf = _reference(x_bf.astype(jnp.float32), target)
    np.testing.assert_allclose(np.asarray(loss_bf), np.asarray(ref_bf),
                               rtol=1e-3, atol=1e-3)

    print("KERNEL_OK")
</pallas_src>

<mosaic_0001>
module attributes {stable_mosaic.version = 11 : i64} {
  func.func @_dc_bce_stats_kernel(%arg0: i32, %arg1: i32, %arg2: i32, %arg3: memref<1x1x16x128xf32, #tpu.memory_space<vmem>>, %arg4: memref<1x1x16x128xbf16, #tpu.memory_space<vmem>>, %arg5: memref<1x1x4x8x128xf32, #tpu.memory_space<vmem>>) attributes {dimension_semantics = [#tpu.dimension_semantics<parallel>, #tpu.dimension_semantics<parallel>, #tpu.dimension_semantics<arbitrary>], iteration_bounds = array<i64: 2, 4, 1>, scalar_prefetch = 0 : i64, scratch_operands = 0 : i64, tpu.core_type = #tpu.core_type<tc>, window_params = [{transform_indices = @transform_0, window_bounds = array<i64: 1, 1, 16, 128>}, {transform_indices = @transform_1, window_bounds = array<i64: 1, 1, 16, 128>}, {transform_indices = @transform_2, window_bounds = array<i64: 1, 1, 4, 8, 128>}]} {
    %c0 = arith.constant 0 : index
    %c0_0 = arith.constant 0 : index
    %c0_1 = arith.constant 0 : index
    %c0_2 = arith.constant 0 : index
    %0 = vector.load %arg3[%c0, %c0_0, %c0_1, %c0_2] : memref<1x1x16x128xf32, #tpu.memory_space<vmem>>, vector<1x1x16x128xf32>
    %1 = vector.shape_cast %0 : vector<1x1x16x128xf32> to vector<16x128xf32>
    %c0_3 = arith.constant 0 : index
    %c0_4 = arith.constant 0 : index
    %c0_5 = arith.constant 0 : index
    %c0_6 = arith.constant 0 : index
    %2 = vector.load %arg4[%c0_3, %c0_4, %c0_5, %c0_6] : memref<1x1x16x128xbf16, #tpu.memory_space<vmem>>, vector<1x1x16x128xbf16>
    %3 = vector.shape_cast %2 : vector<1x1x16x128xbf16> to vector<16x128xbf16>
    %4 = arith.extf %3 : vector<16x128xbf16> to vector<16x128xf32>
    %cst = arith.constant 5.000000e-01 : f32
    %5 = vector.broadcast %cst : f32 to vector<16x128xf32>
    %6 = arith.mulf %5, %1 : vector<16x128xf32>
    %7 = math.tanh %6 : vector<16x128xf32>
    %cst_7 = arith.constant 5.000000e-01 : f32
    %8 = vector.broadcast %cst_7 : f32 to vector<16x128xf32>
    %9 = arith.mulf %8, %7 : vector<16x128xf32>
    %cst_8 = arith.constant 5.000000e-01 : f32
    %10 = vector.broadcast %cst_8 : f32 to vector<16x128xf32>
    %11 = arith.addf %9, %10 : vector<16x128xf32>
    %12 = math.absf %1 : vector<16x128xf32>
    %cst_9 = arith.constant 0.000000e+00 : f32
    %13 = vector.broadcast %cst_9 : f32 to vector<16x128xf32>
    %14 = arith.subf %13, %12 : vector<16x128xf32>
    %15 = math.exp %14 : vector<16x128xf32>
    %cst_10 = arith.constant 0.000000e+00 : f32
    %16 = vector.broadcast %cst_10 : f32 to vector<16x128xf32>
    %17 = arith.maximumf %1, %16 : vector<16x128xf32>
    %18 = arith.mulf %1, %4 : vector<16x128xf32>
    %19 = arith.subf %17, %18 : vector<16x128xf32>
    %cst_11 = arith.constant 1.000000e+00 : f32
    %20 = vector.broadcast %cst_11 : f32 to vector<16x128xf32>
    %21 = arith.addf %20, %15 : vector<16x128xf32>
    %22 = math.log %21 : vector<16x128xf32>
    %23 = arith.addf %19, %22 : vector<16x128xf32>
    %24 = arith.mulf %11, %4 : vector<16x128xf32>
    %25 = vector.shape_cast %24 : vector<16x128xf32> to vector<2x8x128xf32>
    %cst_12 = arith.constant dense<0.000000e+00> : vector<8x128xf32>
    %26 = vector.multi_reduction <add>, %25, %cst_12 [0] : vector<2x8x128xf32> to vector<8x128xf32>
    %27 = vector.shape_cast %11 : vector<16x128xf32> to vector<2x8x128xf32>
    %cst_13 = arith.constant dense<0.000000e+00> : vector<8x128xf32>
    %28 = vector.multi_reduction <add>, %27, %cst_13 [0] : vector<2x8x128xf32> to vector<8x128xf32>
    %29 = vector.shape_cast %4 : vector<16x128xf32> to vector<2x8x128xf32>
    %cst_14 = arith.constant dense<0.000000e+00> : vector<8x128xf32>
    %30 = vector.multi_reduction <add>, %29, %cst_14 [0] : vector<2x8x128xf32> to vector<8x128xf32>
    %31 = vector.shape_cast %23 : vector<16x128xf32> to vector<2x8x128xf32>
    %cst_15 = arith.constant dense<0.000000e+00> : vector<8x128xf32>
    %32 = vector.multi_reduction <add>, %31, %cst_15 [0] : vector<2x8x128xf32> to vector<8x128xf32>
    %c0_i32 = arith.constant 0 : i32
    %33 = arith.cmpi eq, %arg2, %c0_i32 : i32
    %34 = arith.extui %33 : i1 to i32
    %c0_i32_16 = arith.constant 0 : i32
    %35 = arith.cmpi ne, %34, %c0_i32_16 : i32
    scf.if %35 {
      %c0_19 = arith.constant 0 : index
      %c0_20 = arith.constant 0 : index
      %c0_21 = arith.constant 0 : index
      %c0_22 = arith.constant 0 : index
      %c0_23 = arith.constant 0 : index
      %39 = vector.load %arg5[%c0_19, %c0_20, %c0_21, %c0_22, %c0_23] : memref<1x1x4x8x128xf32, #tpu.memory_space<vmem>>, vector<1x1x1x8x128xf32>
      %40 = vector.shape_cast %39 : vector<1x1x1x8x128xf32> to vector<8x128xf32>
      %41 = vector.shape_cast %26 : vector<8x128xf32> to vector<1x1x1x8x128xf32>
      tpu.vector_store %arg5[%c0_19, %c0_20, %c0_21, %c0_22, %c0_23], %41 {strides = array<i32>} : memref<1x1x4x8x128xf32, #tpu.memory_space<vmem>>, vector<1x1x1x8x128xf32>,
      %c0_24 = arith.constant 0 : index
      %c0_25 = arith.constant 0 : index
      %c1 = arith.constant 1 : index
      %c0_26 = arith.constant 0 : index
      %c0_27 = arith.constant 0 : index
      %42 = vector.load %arg5[%c0_24, %c0_25, %c1, %c0_26, %c0_27] : memref<1x1x4x8x128xf32, #tpu.memory_space<vmem>>, vector<1x1x1x8x128xf32>
      %43 = vector.shape_cast %42 : vector<1x1x1x8x128xf32> to vector<8x128xf32>
      %44 = vector.shape_cast %28 : vector<8x128xf32> to vector<1x1x1x8x128xf32>
      tpu.vector_store %arg5[%c0_24, %c0_25, %c1, %c0_26, %c0_27], %44 {strides = array<i32>} : memref<1x1x4x8x128xf32, #tpu.memory_space<vmem>>, vector<1x1x1x8x128xf32>,
      %c0_28 = arith.constant 0 : index
      %c0_29 = arith.constant 0 : index
      %c2 = arith.constant 2 : index
      %c0_30 = arith.constant 0 : index
      %c0_31 = arith.constant 0 : index
      %45 = vector.load %arg5[%c0_28, %c0_29, %c2, %c0_30, %c0_31] : memref<1x1x4x8x128xf32, #tpu.memory_space<vmem>>, vector<1x1x1x8x128xf32>
      %46 = vector.shape_cast %45 : vector<1x1x1x8x128xf32> to vector<8x128xf32>
      %47 = vector.shape_cast %30 : vector<8x128xf32> to vector<1x1x1x8x128xf32>
      tpu.vector_store %arg5[%c0_28, %c0_29, %c2, %c0_30, %c0_31], %47 {strides = array<i32>} : memref<1x1x4x8x128xf32, #tpu.memory_space<vmem>>, vector<1x1x1x8x128xf32>,
      %c0_32 = arith.constant 0 : index
      %c0_33 = arith.constant 0 : index
      %c3 = arith.constant 3 : index
      %c0_34 = arith.constant 0 : index
      %c0_35 = arith.constant 0 : index
      %48 = vector.load %arg5[%c0_32, %c0_33, %c3, %c0_34, %c0_35] : memref<1x1x4x8x128xf32, #tpu.memory_space<vmem>>, vector<1x1x1x8x128xf32>
      %49 = vector.shape_cast %48 : vector<1x1x1x8x128xf32> to vector<8x128xf32>
      %50 = vector.shape_cast %32 : vector<8x128xf32> to vector<1x1x1x8x128xf32>
      tpu.vector_store %arg5[%c0_32, %c0_33, %c3, %c0_34, %c0_35], %50 {strides = array<i32>} : memref<1x1x4x8x128xf32, #tpu.memory_space<vmem>>, vector<1x1x1x8x128xf32>,
    } else {
    }
    %c0_i32_17 = arith.constant 0 : i32
    %36 = arith.cmpi sgt, %arg2, %c0_i32_17 : i32
    %37 = arith.extui %36 : i1 to i32
    %c0_i32_18 = arith.constant 0 : i32
    %38 = arith.cmpi ne, %37, %c0_i32_18 : i32
    scf.if %38 {
      %c0_19 = arith.constant 0 : index
      %c0_20 = arith.constant 0 : index
      %c0_21 = arith.constant 0 : index
      %c0_22 = arith.constant 0 : index
      %c0_23 = arith.constant 0 : index
      %39 = vector.load %arg5[%c0_19, %c0_20, %c0_21, %c0_22, %c0_23] : memref<1x1x4x8x128xf32, #tpu.memory_space<vmem>>, vector<1x1x1x8x128xf32>
      %40 = vector.shape_cast %39 : vector<1x1x1x8x128xf32> to vector<8x128xf32>
      %41 = arith.addf %40, %26 : vector<8x128xf32>
      %c0_24 = arith.constant 0 : index
      %c0_25 = arith.constant 0 : index
      %c0_26 = arith.constant 0 : index
      %c0_27 = arith.constant 0 : index
      %c0_28 = arith.constant 0 : index
      %42 = vector.load %arg5[%c0_24, %c0_25, %c0_26, %c0_27, %c0_28] : memref<1x1x4x8x128xf32, #tpu.memory_space<vmem>>, vector<1x1x1x8x128xf32>
      %43 = vector.shape_cast %42 : vector<1x1x1x8x128xf32> to vector<8x128xf32>
      %44 = vector.shape_cast %41 : vector<8x128xf32> to vector<1x1x1x8x128xf32>
      tpu.vector_store %arg5[%c0_24, %c0_25, %c0_26, %c0_27, %c0_28], %44 {strides = array<i32>} : memref<1x1x4x8x128xf32, #tpu.memory_space<vmem>>, vector<1x1x1x8x128xf32>,
      %c0_29 = arith.constant 0 : index
      %c0_30 = arith.constant 0 : index
      %c1 = arith.constant 1 : index
      %c0_31 = arith.constant 0 : index
      %c0_32 = arith.constant 0 : index
      %45 = vector.load %arg5[%c0_29, %c0_30, %c1, %c0_31, %c0_32] : memref<1x1x4x8x128xf32, #tpu.memory_space<vmem>>, vector<1x1x1x8x128xf32>
      %46 = vector.shape_cast %45 : vector<1x1x1x8x128xf32> to vector<8x128xf32>
      %47 = arith.addf %46, %28 : vector<8x128xf32>
      %c0_33 = arith.constant 0 : index
      %c0_34 = arith.constant 0 : index
      %c1_35 = arith.constant 1 : index
      %c0_36 = arith.constant 0 : index
      %c0_37 = arith.constant 0 : index
      %48 = vector.load %arg5[%c0_33, %c0_34, %c1_35, %c0_36, %c0_37] : memref<1x1x4x8x128xf32, #tpu.memory_space<vmem>>, vector<1x1x1x8x128xf32>
      %49 = vector.shape_cast %48 : vector<1x1x1x8x128xf32> to vector<8x128xf32>
      %50 = vector.shape_cast %47 : vector<8x128xf32> to vector<1x1x1x8x128xf32>
      tpu.vector_store %arg5[%c0_33, %c0_34, %c1_35, %c0_36, %c0_37], %50 {strides = array<i32>} : memref<1x1x4x8x128xf32, #tpu.memory_space<vmem>>, vector<1x1x1x8x128xf32>,
      %c0_38 = arith.constant 0 : index
      %c0_39 = arith.constant 0 : index
      %c2 = arith.constant 2 : index
      %c0_40 = arith.constant 0 : index
      %c0_41 = arith.constant 0 : index
      %51 = vector.load %arg5[%c0_38, %c0_39, %c2, %c0_40, %c0_41] : memref<1x1x4x8x128xf32, #tpu.memory_space<vmem>>, vector<1x1x1x8x128xf32>
      %52 = vector.shape_cast %51 : vector<1x1x1x8x128xf32> to vector<8x128xf32>
      %53 = arith.addf %52, %30 : vector<8x128xf32>
      %c0_42 = arith.constant 0 : index
      %c0_43 = arith.constant 0 : index
      %c2_44 = arith.constant 2 : index
      %c0_45 = arith.constant 0 : index
      %c0_46 = arith.constant 0 : index
      %54 = vector.load %arg5[%c0_42, %c0_43, %c2_44, %c0_45, %c0_46] : memref<1x1x4x8x128xf32, #tpu.memory_space<vmem>>, vector<1x1x1x8x128xf32>
      %55 = vector.shape_cast %54 : vector<1x1x1x8x128xf32> to vector<8x128xf32>
      %56 = vector.shape_cast %53 : vector<8x128xf32> to vector<1x1x1x8x128xf32>
      tpu.vector_store %arg5[%c0_42, %c0_43, %c2_44, %c0_45, %c0_46], %56 {strides = array<i32>} : memref<1x1x4x8x128xf32, #tpu.memory_space<vmem>>, vector<1x1x1x8x128xf32>,
      %c0_47 = arith.constant 0 : index
      %c0_48 = arith.constant 0 : index
      %c3 = arith.constant 3 : index
      %c0_49 = arith.constant 0 : index
      %c0_50 = arith.constant 0 : index
      %57 = vector.load %arg5[%c0_47, %c0_48, %c3, %c0_49, %c0_50] : memref<1x1x4x8x128xf32, #tpu.memory_space<vmem>>, vector<1x1x1x8x128xf32>
      %58 = vector.shape_cast %57 : vector<1x1x1x8x128xf32> to vector<8x128xf32>
      %59 = arith.addf %58, %32 : vector<8x128xf32>
      %c0_51 = arith.constant 0 : index
      %c0_52 = arith.constant 0 : index
      %c3_53 = arith.constant 3 : index
      %c0_54 = arith.constant 0 : index
      %c0_55 = arith.constant 0 : index
      %60 = vector.load %arg5[%c0_51, %c0_52, %c3_53, %c0_54, %c0_55] : memref<1x1x4x8x128xf32, #tpu.memory_space<vmem>>, vector<1x1x1x8x128xf32>
      %61 = vector.shape_cast %60 : vector<1x1x1x8x128xf32> to vector<8x128xf32>
      %62 = vector.shape_cast %59 : vector<8x128xf32> to vector<1x1x1x8x128xf32>
      tpu.vector_store %arg5[%c0_51, %c0_52, %c3_53, %c0_54, %c0_55], %62 {strides = array<i32>} : memref<1x1x4x8x128xf32, #tpu.memory_space<vmem>>, vector<1x1x1x8x128xf32>,
    } else {
    }
    return
  }
  func.func @transform_0(%arg0: i32, %arg1: i32, %arg2: i32) -> (i32, i32, i32, i32) {
    %c0_i32 = arith.constant 0 : i32
    %c0_i32_0 = arith.constant 0 : i32
    return %arg0, %arg1, %arg2, %c0_i32 : i32, i32, i32, i32
  }
  func.func @transform_1(%arg0: i32, %arg1: i32, %arg2: i32) -> (i32, i32, i32, i32) {
    %c0_i32 = arith.constant 0 : i32
    %c0_i32_0 = arith.constant 0 : i32
    return %arg0, %arg1, %arg2, %c0_i32 : i32, i32, i32, i32
  }
  func.func @transform_2(%arg0: i32, %arg1: i32, %arg2: i32) -> (i32, i32, i32, i32, i32) {
    %c0_i32 = arith.constant 0 : i32
    %c0_i32_0 = arith.constant 0 : i32
    %c0_i32_1 = arith.constant 0 : i32
    %c0_i32_2 = arith.constant 0 : i32
    return %arg0, %arg1, %c0_i32, %c0_i32_0, %c0_i32_1 : i32, i32, i32, i32, i32
  }
}

</mosaic_0001>

<llo_original>
// kernel: tpu_custom_call.1
$region0: #{tpu_custom_call.1}
  #allocation0 [shape = 'u32[]', space=smem, size = 0x4, offset = 0x4, fixed_abs, tag = 'smem constant byte address 0x4 - core index']
  #allocation1 [shape = 'u32[144,128]{1,0:T(1,128)}', space=vmem, size = 0x12000, scoped, tag = 'internal scratch']
  %s0 = inlined_call_operand.hbm [shape: f32[2,4,16,128], index: 0, kind: input, shape index: {}]
  %s1 = inlined_call_operand.hbm [shape: bf16[2,4,16,128], index: 1, kind: input, shape index: {}]
  %s2 = inlined_call_operand.hbm [shape: f32[2,4,4,8,128], index: 2, kind: output, shape index: {}]
  %s3 = sld [smem:[#allocation0]]
  $region57: #{tpu_custom_call.1} parent=0
    _
  %s5 = ssub.s32 1, %s3
  %s6 = scalar_select 0, %s5, %s3
  $region1: #{tpu_custom_call.1} parent=0
    #allocation2 [shape = 'u8[16384]{0}', space=vmem, size = 0x4000, scoped, tag = 'input window, operand 0']
    #allocation3 [shape = 's32[2]{0}', space=sflag, size = 0x8, scoped, tag = 'scoped memory for tpu_custom_call.1']
    #allocation4 [shape = 's32[2]{0}', space=sflag, size = 0x8, scoped, tag = 'scoped memory for tpu_custom_call.1']
    #allocation5 [shape = 'u8[8192]{0}', space=vmem, size = 0x2000, scoped, tag = 'input window, operand 1']
    #allocation6 [shape = 's32[2]{0}', space=sflag, size = 0x8, scoped, tag = 'scoped memory for tpu_custom_call.1']
    #allocation7 [shape = 'u8[32768]{0}', space=vmem, size = 0x8000, scoped, tag = 'output window, operand 0']
    %7 = vsyncpa [#allocation3], 0
    %s8 = scalar_lea.sflag [#allocation3], 1
    %9 = vsyncpa %s8, 0
    %10 = vsyncpa [#allocation6], 0
    %s11 = scalar_lea.sflag [#allocation6], 1
    %12 = vsyncpa %s11, 0
    %13 = vsyncpa [#allocation4], 0
    %s14 = scalar_lea.sflag [#allocation4], 1
    %15 = vsyncpa %s14, 0
    loop: start=0, step=1, limit=10
    $region2: #{tpu_custom_call.1} parent=1 // loop_pre_header
      _
    $region3: #{tpu_custom_call.1} parent=1 // loop_header
      %s17 = sphi 0, %s21
      %p18 = scmp.ge.s32.totalorder %s17, 10
      %s24 = sphi 0, %s43
      %s25 = sphi 0, %s39
      %s26 = sphi 0, %s35
      %s27 = sphi 0, %s24
      %s28 = sphi 0, %s25
      %s29 = sphi 0, %s26
      %s30 = sphi 0, %s27
      %s31 = sphi 0, %s28
      %s32 = sphi 0, %s29
      %s50 = sphi 0, %s52
      %s53 = sphi 0, %s50
      %s54 = sphi 0, %s53
      %s70 = sphi 0, %s54
      %s80 = sphi 0, %s82
      %s83 = sphi 0, %s80
      %s84 = sphi 0, %s83
      %s100 = sphi 0, %s84
      %s108 = sphi 0, %s110
      %s111 = sphi 0, %s108
      %s112 = sphi 0, %s111
      %s128 = sphi 0, %s112
    $region4: #{tpu_custom_call.1} parent=1 // loop_header_branch
      %20 = sbr.rel (%p18) target = $region8
    $region5: #{tpu_custom_call.1} parent=1 // loop_body
      %s22 = ssub.s32 %s17, 1
      %s23 = ssub.s32 %s17, 2
      %s33 = sadd.s32 1, %s26
      %p34 = scmp.ge.s32.totalorder %s33, 1
      %s35 = scalar_select %p34, 0, %s33
      %s36 = sadd.s32 1, %s25
      %s37 = scalar_select %p34, %s36, %s25
      %p38 = scmp.ge.s32.totalorder %s37, 4
      %s39 = scalar_select %p38, 0, %s37
      %s40 = sadd.s32 1, %s24
      %s41 = scalar_select %p38, %s40, %s24
      %p42 = scmp.ge.s32.totalorder %s41, 2
      %s43 = scalar_select %p42, 0, %s41
      %s44 = ssub.s32 %s24, %s43
      %s45 = ssub.s32 %s25, %s39
      %s46 = sor.u32 %s44, %s45
      %s47 = ssub.s32 %s26, %s35
      %s48 = sor.u32 %s46, %s47
      %p49 = scmp.eq.s32.totalorder %s48, 0
      %s51 = sadd.s32 %s50, 1
      %s52 = scalar_select %p49, %s50, %s51
      %p55 = pneg %p49
      %p56 = scmp.eq.s32.totalorder %s17, 7
      %p57 = por %p55, %p56
      %p58 = scmp.ne.s32.totalorder %s50, %s53
      %p59 = scmp.eq.s32.totalorder %s17, 0
      %p60 = por %p58, %p59
      %p61 = scmp.ne.s32.totalorder %s50, %s53
      %p62 = scmp.eq.s32.totalorder %s22, 7
      %p63 = por %p61, %p62
      %p64 = scmp.ne.s32.totalorder %s53, %s54
      %p65 = scmp.eq.s32.totalorder %s22, 0
      %p66 = por %p64, %p65
      %p67 = scmp.ne.s32.totalorder %s53, %s54
      %p68 = scmp.eq.s32.totalorder %s23, 7
      %p69 = por %p67, %p68
      %p71 = scmp.ne.s32.totalorder %s54, %s70
      %p72 = scmp.eq.s32.totalorder %s23, 0
      %p73 = por %p71, %p72
      %s74 = ssub.s32 %s24, %s43
      %s75 = ssub.s32 %s25, %s39
      %s76 = sor.u32 %s74, %s75
      %s77 = ssub.s32 %s26, %s35
      %s78 = sor.u32 %s76, %s77
      %p79 = scmp.eq.s32.totalorder %s78, 0
      %s81 = sadd.s32 %s80, 1
      %s82 = scalar_select %p79, %s80, %s81
      %p85 = pneg %p79
      %p86 = scmp.eq.s32.totalorder %s17, 7
      %p87 = por %p85, %p86
      %p88 = scmp.ne.s32.totalorder %s80, %s83
      %p89 = scmp.eq.s32.totalorder %s17, 0
      %p90 = por %p88, %p89
      %p91 = scmp.ne.s32.totalorder %s80, %s83
      %p92 = scmp.eq.s32.totalorder %s22, 7
      %p93 = por %p91, %p92
      %p94 = scmp.ne.s32.totalorder %s83, %s84
      %p95 = scmp.eq.s32.totalorder %s22, 0
      %p96 = por %p94, %p95
      %p97 = scmp.ne.s32.totalorder %s83, %s84
      %p98 = scmp.eq.s32.totalorder %s23, 7
      %p99 = por %p97, %p98
      %p101 = scmp.ne.s32.totalorder %s84, %s100
      %p102 = scmp.eq.s32.totalorder %s23, 0
      %p103 = por %p101, %p102
      %s104 = ssub.s32 %s24, %s43
      %s105 = ssub.s32 %s25, %s39
      %s106 = sor.u32 %s104, %s105
      %p107 = scmp.eq.s32.totalorder %s106, 0
      %s109 = sadd.s32 %s108, 1
      %s110 = scalar_select %p107, %s108, %s109
      %p113 = pneg %p107
      %p114 = scmp.eq.s32.totalorder %s17, 7
      %p115 = por %p113, %p114
      %p116 = scmp.ne.s32.totalorder %s108, %s111
      %p117 = scmp.eq.s32.totalorder %s17, 0
      %p118 = por %p116, %p117
      %p119 = scmp.ne.s32.totalorder %s108, %s111
      %p120 = scmp.eq.s32.totalorder %s22, 7
      %p121 = por %p119, %p120
      %p122 = scmp.ne.s32.totalorder %s111, %s112
      %p123 = scmp.eq.s32.totalorder %s22, 0
      %p124 = por %p122, %p123
      %p125 = scmp.ne.s32.totalorder %s111, %s112
      %p126 = scmp.eq.s32.totalorder %s23, 7
      %p127 = por %p125, %p126
      %p129 = scmp.ne.s32.totalorder %s112, %s128
      %p130 = scmp.eq.s32.totalorder %s23, 0
      %p131 = por %p129, %p130
      %p132 = scmp.le.s32.totalorder 1, %s17
      %p133 = scmp.lt.s32.totalorder %s17, 9
      %p134 = pnand %p132, %p133
      %p135 = pneg %p134
      // Predicated region
      $region9: #{tpu_custom_call.1} parent=5 // pred_check
        _
      $region10: #{tpu_custom_call.1} parent=5 // pred_check_branch
        %137 = sbr.rel (%p134) target = $region12
      $region11: #{tpu_custom_call.1} parent=5 // pred_region
        %s138 = ssub.s32 %s17, 1
      $region12: #{tpu_custom_call.1} parent=5 // pred_fallthru
        _
      %p139 = scmp.lt.s32.totalorder %s17, 8
      // Predicated region
      $region13: #{tpu_custom_call.1} parent=5 // pred_check
        %p140 = pneg %p139
      $region14: #{tpu_custom_call.1} parent=5 // pred_check_branch
        %142 = sbr.rel (%p140) target = $region16
      $region15: #{tpu_custom_call.1} parent=5 // pred_region
        // Predicated region
        $region17: #{tpu_custom_call.1} parent=15 // pred_check
          %p143 = pneg %p60
        $region18: #{tpu_custom_call.1} parent=15 // pred_check_branch
          %145 = sbr.rel (%p143) target = $region20
        $region19: #{tpu_custom_call.1} parent=15 // pred_region
          %s146 = sand.u32 %s50, 1
          %s147 = scalar_lea.sflag [#allocation3], %s146
          %s148 = sand.u32 %s50, 1
          %s149 = smul.addr %s148, 16
          %s150 = scalar_lea.vmem [#allocation2], %s149
          %s151 = smul.u32 2, %s26
          %s153 = ssub.s32 256, 256
          %154 = vsyncadd %s147, %s153
          %s155 = smul.addr %s25, 2
          %s156 = sadd.s32 %s151, %s155
          %s157 = smul.addr %s24, 8
          %s158 = sadd.s32 %s156, %s157
          %s159 = smul.addr %s158, 128
          %s160 = scalar_lea.hbm %s0, %s159
          %s161 = sshll.u32 %s150, 4
          %s162 = int_to_ptr.vmem [resolvable:$true] %s161
          %167 = dma.hbm_to_vmem [thread:$0]  %s160, 256, %s162, %s147, 128, 128, 8
        $region20: #{tpu_custom_call.1} parent=15 // pred_fallthru
          _
        // Predicated region
        $region21: #{tpu_custom_call.1} parent=15 // pred_check
          %p168 = pneg %p90
        $region22: #{tpu_custom_call.1} parent=15 // pred_check_branch
          %170 = sbr.rel (%p168) target = $region24
        $region23: #{tpu_custom_call.1} parent=15 // pred_region
          %s171 = sand.u32 %s80, 1
          %s172 = scalar_lea.sflag [#allocation6], %s171
          %s173 = sand.u32 %s80, 1
          %s174 = smul.addr %s173, 8
          %s175 = scalar_lea.vmem [#allocation5], %s174
          %s176 = smul.u32 2, %s26
          %s178 = ssub.s32 128, 128
          %179 = vsyncadd %s172, %s178
          %s180 = smul.addr %s25, 2
          %s181 = sadd.s32 %s176, %s180
          %s182 = smul.addr %s24, 8
          %s183 = sadd.s32 %s181, %s182
          %s184 = smul.addr %s183, 64
          %s185 = scalar_lea.hbm %s1, %s184
          %s186 = sshll.u32 %s175, 4
          %s187 = int_to_ptr.vmem [resolvable:$true] %s186
          %192 = dma.hbm_to_vmem [thread:$0]  %s185, 128, %s187, %s172, 64, 64, 4
        $region24: #{tpu_custom_call.1} parent=15 // pred_fallthru
          _
      $region16: #{tpu_custom_call.1} parent=5 // pred_fallthru
        _
      %p193 = scmp.le.s32.totalorder 1, %s17
      %p194 = scmp.lt.s32.totalorder %s17, 9
      %p195 = pnand %p193, %p194
      %p196 = pneg %p195
      // Predicated region
      $region25: #{tpu_custom_call.1} parent=5 // pred_check
        _
      $region26: #{tpu_custom_call.1} parent=5 // pred_check_branch
        %198 = sbr.rel (%p195) target = $region28
      $region27: #{tpu_custom_call.1} parent=5 // pred_region
        %s199 = ssub.s32 %s17, 1
        %s200 = sand.u32 %s53, 1
        %s201 = scalar_lea.sflag [#allocation3], %s200
        %s202 = sand.u32 %s53, 1
        %s203 = smul.addr %s202, 16
        %s204 = scalar_lea.vmem [#allocation2], %s203
        // Predicated region
        $region29: #{tpu_custom_call.1} parent=27 // pred_check
          %p205 = pneg %p66
        $region30: #{tpu_custom_call.1} parent=27 // pred_check_branch
          %207 = sbr.rel (%p205) target = $region32
        $region31: #{tpu_custom_call.1} parent=27 // pred_region
          %208 = dma.done %s201, 256
        $region32: #{tpu_custom_call.1} parent=27 // pred_fallthru
          _
        %s209 = sand.u32 %s83, 1
        %s210 = scalar_lea.sflag [#allocation6], %s209
        %s211 = sand.u32 %s83, 1
        %s212 = smul.addr %s211, 8
        %s213 = scalar_lea.vmem [#allocation5], %s212
        // Predicated region
        $region33: #{tpu_custom_call.1} parent=27 // pred_check
          %p214 = pneg %p96
        $region34: #{tpu_custom_call.1} parent=27 // pred_check_branch
          %216 = sbr.rel (%p214) target = $region36
        $region35: #{tpu_custom_call.1} parent=27 // pred_region
          %217 = dma.done %s210, 128
        $region36: #{tpu_custom_call.1} parent=27 // pred_fallthru
          _
        %s218 = sand.u32 %s53, 1
        %s219 = scalar_lea.sflag [#allocation3], %s218
        %s220 = sand.u32 %s53, 1
        %s221 = smul.addr %s220, 16
        %s222 = scalar_lea.vmem [#allocation2], %s221
        %p223 = pneg %p66
        %p224 = pneg %p63
        %s225 = sand.u32 %s83, 1
        %s226 = scalar_lea.sflag [#allocation6], %s225
        %s227 = sand.u32 %s83, 1
        %s228 = smul.addr %s227, 8
        %s229 = scalar_lea.vmem [#allocation5], %s228
        %p230 = pneg %p96
        %p231 = pneg %p93
        %p232 = pneg %p124
        %p233 = pneg %p121
        %s234 = sand.u32 %s111, 1
        %s235 = scalar_lea.sflag [#allocation4], %s234
        %s236 = sand.u32 %s111, 1
        %s237 = smul.addr %s236, 32
        %s238 = scalar_lea.vmem [#allocation7], %s237
        %s239 = smul.u32 2, %s29
        %s240 = smul.u32 2, %s29
        %v241 = vld [vmem:[%s204] sm:$0xff]
        %v242 = vld [vmem:[%s204 + $0x8] sm:$0xff]
        %v243 = vld [vmem:[%s213] sm:$0xf]
        %v244 = vld [vmem:[%s213 + $0x4] sm:$0xf]
        %v245 = vunpack.c.l.bf16 %v243
        %v246 = vunpack.c.l.bf16 %v244
        %v247 = vmul.f32 %v241, 0.5
        %v248 = vmul.f32 %v242, 0.5
        %v249 = vtanh.pop %v247
        %v250 = vtanh.pop %v248
        %v251 = vmul.f32 %v249, 0.5
        %v252 = vmul.f32 %v250, 0.5
        %v253 = vadd.f32 %v251, 0.5
        %v254 = vadd.f32 %v252, 0.5
        %v255 = vand.u32 2147483647, %v241
        %v256 = vand.u32 2147483647, %v242
        %v257 = vsub.f32 0.0, %v255
        %v258 = vsub.f32 0.0, %v256
        %v259 = vmul.f32 %v257, 1.442695
        %v260 = vpow.pop %v259
        %v261 = vmul.f32 %v258, 1.442695
        %v262 = vpow.pop %v261
        %v263 = vmax.f32 %v241, 0.0
        %v264 = vmax.f32 %v242, 0.0
        %v265 = vmul.f32 %v241, %v245
        %v266 = vmul.f32 %v242, %v246
        %v267 = vsub.f32 %v263, %v265
        %v268 = vsub.f32 %v264, %v266
        %v269 = vadd.f32 %v260, 1.0
        %v270 = vadd.f32 %v262, 1.0
        %v271 = vlog2.pop %v269
        %v272 = vmul.f32 %v271, 0.6931472
        %v273 = vlog2.pop %v270
        %v274 = vmul.f32 %v273, 0.6931472
        %v275 = vadd.f32 %v267, %v272
        %v276 = vadd.f32 %v268, %v274
        %v277 = vmul.f32 %v253, %v245
        %v278 = vmul.f32 %v254, %v246
        %v279 = vadd.f32 %v277, %v278
        %v280 = vadd.f32 %v253, %v254
        %v281 = vadd.f32 %v245, %v246
        %v282 = vadd.f32 %v275, %v276
        %p283 = scmp.eq.s32.totalorder %s29, 0
        // Predicated region
        $region37: #{tpu_custom_call.1} parent=27 // pred_check
          %p284 = pneg %p283
        $region38: #{tpu_custom_call.1} parent=27 // pred_check_branch
          %286 = sbr.rel (%p284) target = $region40
        $region39: #{tpu_custom_call.1} parent=27 // pred_region
          %287 = vst [vmem:[%s238] sm:$0xff] %v279
          %s288 = scalar_lea.vmem %s238, 8 [#allocation7]
          %289 = vst [vmem:[%s288] sm:$0xff] %v280
          %s290 = scalar_lea.vmem %s238, 16 [#allocation7]
          %291 = vst [vmem:[%s290] sm:$0xff] %v281
          %s292 = scalar_lea.vmem %s238, 24 [#allocation7]
          %293 = vst [vmem:[%s292] sm:$0xff] %v282
        $region40: #{tpu_custom_call.1} parent=27 // pred_fallthru
          _
        %p294 = scmp.gt.s32.totalorder %s29, 0
        // Predicated region
        $region41: #{tpu_custom_call.1} parent=27 // pred_check
          %p295 = pneg %p294
        $region42: #{tpu_custom_call.1} parent=27 // pred_check_branch
          %297 = sbr.rel (%p295) target = $region44
        $region43: #{tpu_custom_call.1} parent=27 // pred_region
          %v298 = vld [vmem:[%s238] sm:$0xff]
          %v299 = vadd.f32 %v298, %v279
          %300 = vst [vmem:[%s238] sm:$0xff] %v299
          %s301 = scalar_lea.vmem %s238, 8 [#allocation7]
          %v302 = vld [vmem:[%s301] sm:$0xff]
          %v303 = vadd.f32 %v302, %v280
          %304 = vst [vmem:[%s301] sm:$0xff] %v303
          %s305 = scalar_lea.vmem %s238, 16 [#allocation7]
          %v306 = vld [vmem:[%s305] sm:$0xff]
          %v307 = vadd.f32 %v306, %v281
          %308 = vst [vmem:[%s305] sm:$0xff] %v307
          %s309 = scalar_lea.vmem %s238, 24 [#allocation7]
          %v310 = vld [vmem:[%s309] sm:$0xff]
          %v311 = vadd.f32 %v310, %v282
          %312 = vst [vmem:[%s309] sm:$0xff] %v311
        $region44: #{tpu_custom_call.1} parent=27 // pred_fallthru
          _
        %s313 = sand.u32 %s111, 1
        %s314 = scalar_lea.sflag [#allocation4], %s313
        %s315 = sand.u32 %s111, 1
        %s316 = smul.addr %s315, 32
        %s317 = scalar_lea.vmem [#allocation7], %s316
        // Predicated region
        $region45: #{tpu_custom_call.1} parent=27 // pred_check
          %p318 = pneg %p121
        $region46: #{tpu_custom_call.1} parent=27 // pred_check_branch
          %320 = sbr.rel (%p318) target = $region48
        $region47: #{tpu_custom_call.1} parent=27 // pred_region
          %s322 = ssub.s32 512, 512
          %323 = vsyncadd %s314, %s322
          %s324 = smul.addr %s28, 4
          %s325 = smul.addr %s27, 16
          %s326 = sadd.s32 %s324, %s325
          %s327 = smul.addr %s326, 128
          %s328 = scalar_lea.hbm %s2, %s327
          %s329 = sshll.u32 %s317, 4
          %s330 = int_to_ptr.vmem [resolvable:$true] %s329
          %335 = dma.vmem_to_hbm [thread:$0]  %s330, 512, %s328, %s314, 128, 128, 8
        $region48: #{tpu_custom_call.1} parent=27 // pred_fallthru
          _
      $region28: #{tpu_custom_call.1} parent=5 // pred_fallthru
        _
      %p336 = scmp.le.s32.totalorder 2, %s17
      // Predicated region
      $region49: #{tpu_custom_call.1} parent=5 // pred_check
        %p337 = pneg %p336
      $region50: #{tpu_custom_call.1} parent=5 // pred_check_branch
        %339 = sbr.rel (%p337) target = $region52
      $region51: #{tpu_custom_call.1} parent=5 // pred_region
        %s340 = ssub.s32 %s17, 2
        // Predicated region
        $region53: #{tpu_custom_call.1} parent=51 // pred_check
          %p341 = pneg %p127
        $region54: #{tpu_custom_call.1} parent=51 // pred_check_branch
          %343 = sbr.rel (%p341) target = $region56
        $region55: #{tpu_custom_call.1} parent=51 // pred_region
          %s344 = sand.u32 %s112, 1
          %s345 = scalar_lea.sflag [#allocation4], %s344
          %s346 = sand.u32 %s112, 1
          %s347 = smul.addr %s346, 32
          %s348 = scalar_lea.vmem [#allocation7], %s347
          %349 = dma.done %s345, 512
        $region56: #{tpu_custom_call.1} parent=51 // pred_fallthru
          _
      $region52: #{tpu_custom_call.1} parent=5 // pred_fallthru
        _
    $region6: #{tpu_custom_call.1} parent=1 // loop_footer
      %s21 = sadd.s32 1, %s17
    $region7: #{tpu_custom_call.1} parent=1 // loop_footer_branch
      %16 = sbr.rel target = $region3
    $region8: #{tpu_custom_call.1} parent=1 // loop_exit
      _
    %350 = vsyncpa [#allocation3], 1
    %s351 = scalar_lea.sflag [#allocation3], 1
    %352 = vsyncpa %s351, 1
    %353 = vsyncpa [#allocation6], 1
    %s354 = scalar_lea.sflag [#allocation6], 1
    %355 = vsyncpa %s354, 1
    %356 = vsyncpa [#allocation4], 1
    %s357 = scalar_lea.sflag [#allocation4], 1
    %358 = vsyncpa %s357, 1

</llo_original>
